<compile_context>
chip_gen: v7x
topology: tpu7x:2x2x1
jax: 0.10.0
libtpu: 0.0.40
codegen_flags: <defaults>
</compile_context>

<pallas_src>
import functools

import jax
import jax.numpy as jnp
from jax.experimental import pallas as pl
from jax.experimental.pallas import tpu as pltpu


def _ce_partial_kernel(logits_ref, targets_ref, partial_ref, *, n_rows, tile_n):
    """Partial sum of per-row NLL for one row-tile.

    logits_ref : (TILE_N, C)  native-dtype VMEM (upcast to f32 in-kernel)
    targets_ref: (TILE_N, 1)  int32 VMEM
    partial_ref: (1, 1)       f32 VMEM (4-byte per-tile write; negligible
                              vs. the (TILE_N, C) input DMA)

    Rows past the true N (ragged last tile) are masked with a position-based
    where-select, so garbage in the boundary block cannot poison the sum.
    """
    logits = logits_ref[...].astype(jnp.float32)                    # (T, C)
    tgt = targets_ref[...]                                          # (T, 1) int32

    # Numerically stable log-sum-exp; gather the target logit from the
    # *shifted* logits so the row_max terms cancel analytically.
    row_max = jnp.max(logits, axis=-1, keepdims=True)               # (T, 1)
    shifted = logits - row_max                                      # (T, C)
    sumexp = jnp.sum(jnp.exp(shifted), axis=-1, keepdims=True)      # (T, 1)

    col_ids = jax.lax.broadcasted_iota(jnp.int32, logits.shape, 1)  # (T, C)
    tgt_shifted = jnp.sum(jnp.where(col_ids == tgt, shifted, 0.0),
                          axis=-1, keepdims=True)                   # (T, 1)

    nll = jnp.log(sumexp) - tgt_shifted                             # (T, 1)

    # Position-based validity mask for the ragged last tile (select, not
    # multiply, so NaN/Inf from undefined boundary rows cannot propagate).
    row_start = pl.program_id(0) * tile_n
    row_ids = jax.lax.broadcasted_iota(jnp.int32, nll.shape, 0) + row_start
    nll = jnp.where(row_ids < n_rows, nll, 0.0)

    partial_ref[...] = jnp.sum(nll).reshape(1, 1)


def _pick_tile_n(n, c, dtype):
    """Byte-based row-tile sizing with lane-padded VMEM accounting.

    Per-row footprint estimate:
      ~4 live (T, round_up(C,128)) f32 intermediates (lane-padded working set)
      + 2x double-buffered native-dtype logits rows
      + 2x double-buffered int32 target rows.
    Budgeted at ~28 MiB so the whole kernel stays well inside v7x's 64 MiB
    physical VMEM (we request a 48 MiB scoped limit); v5e/v6e have 128 MiB.
    Per-tile logits HBM bytes are additionally capped at ~8 MiB.
    """
    lanes_c = ((c + 127) // 128) * 128
    in_row = max(1, c * jnp.dtype(dtype).itemsize)
    bytes_per_row = 4 * (lanes_c * 4) + 2 * in_row + 2 * 4
    vmem_rows = max(8, ((28 * 1024 * 1024) // bytes_per_row) // 8 * 8)
    hbm_rows = max(8, ((8 * 1024 * 1024) // in_row) // 8 * 8)
    tile = min(vmem_rows, hbm_rows, 65536)
    # Ensure >= 2 tiles when possible so ("parallel",) grid sharding can use
    # both TensorCores on v7x (one extra, cheap grid step on v5e/v6e).
    half = max(8, (((n + 1) // 2) + 7) // 8 * 8)
    tile = min(tile, half)
    if tile >= n:
        return n, 1                       # single full-extent block
    return tile, (n + tile - 1) // tile   # tile is a multiple of 8


@jax.jit
def cross_entropy_loss_pallas(logits, targets):
    """nn.CrossEntropyLoss(logits, targets) with mean reduction (TPU Pallas)."""
    n, c = logits.shape
    targets2d = targets.astype(jnp.int32).reshape(n, 1)

    tile_n, num_tiles = _pick_tile_n(n, c, logits.dtype)

    partials = pl.pallas_call(
        functools.partial(_ce_partial_kernel, n_rows=n, tile_n=tile_n),
        out_shape=jax.ShapeDtypeStruct((num_tiles, 1), jnp.float32),
        grid_spec=pl.GridSpec(
            grid=(num_tiles,),
            in_specs=[
                pl.BlockSpec((tile_n, c), lambda i: (i, 0)),
                pl.BlockSpec((tile_n, 1), lambda i: (i, 0)),
            ],
            out_specs=pl.BlockSpec((1, 1), lambda i: (i, 0)),
        ),
        compiler_params=pltpu.CompilerParams(
            dimension_semantics=("parallel",),   # shard tiles across TCs (v7x)
            vmem_limit_bytes=48 << 20,
        ),
        cost_estimate=pl.CostEstimate(
            flops=5 * n * c,
            transcendentals=n * c,
            bytes_accessed=n * c * jnp.dtype(logits.dtype).itemsize
            + n * 4 + num_tiles * 4,
        ),
    )(logits, targets2d)

    # Finalize outside the kernel: divide by the TRUE number of rows.
    return jnp.sum(partials) / jnp.float32(n)


class PPO:
    """JAX/Pallas port of the PPO wrapper (hyper-params + CE criterion).

    The original module holds an actor_critic and an Adam optimizer; the only
    forward-pass-relevant compute is the cross-entropy criterion, executed
    on-TPU via the Pallas kernel above.
    """

    def __init__(self, clip_param, ppo_epoch, num_mini_batch, value_loss_coef,
                 entropy_coef, lr=None, eps=None, max_grad_norm=None,
                 use_clipped_value_loss=True):
        self.clip_param = clip_param
        self.ppo_epoch = ppo_epoch
        self.num_mini_batch = num_mini_batch
        self.value_loss_coef = value_loss_coef
        self.entropy_coef = entropy_coef
        self.max_grad_norm = max_grad_norm
        self.use_clipped_value_loss = use_clipped_value_loss
        # TODO(synk): Adam optimizer / backward / clip_grad_norm_ / rollout
        # generator are training machinery with no forward-pass Pallas
        # equivalent; not ported.

    def criterion(self, value_preds_batch, st_actions_batch):
        # Mirrors: self.criterion(value_preds_batch, st_actions_batch.squeeze(1))
        targets = jnp.squeeze(st_actions_batch, axis=1)
        return cross_entropy_loss_pallas(value_preds_batch, targets)


if __name__ == "__main__":
    key = jax.random.PRNGKey(0)
    k1, k2 = jax.random.split(key)

    N, C = 8, 32  # mini-batch size, number of action classes
    value_preds_batch = jax.random.normal(k1, (N, C), dtype=jnp.float32)
    st_actions_batch = jax.random.randint(k2, (N, 1), 0, C, dtype=jnp.int32)

    ppo = PPO(clip_param=0.2, ppo_epoch=4, num_mini_batch=2,
              value_loss_coef=0.5, entropy_coef=0.01,
              lr=2.5e-4, eps=1e-5, max_grad_norm=0.5)

    loss = ppo.criterion(value_preds_batch, st_actions_batch)
    loss = jax.block_until_ready(loss)

    # Reference check (plain JAX) of the cross-entropy semantics.
    tgt = jnp.squeeze(st_actions_batch, axis=1)
    logp = jax.nn.log_softmax(value_preds_batch, axis=-1)
    ref = -jnp.mean(logp[jnp.arange(N), tgt])
    assert jnp.allclose(loss, ref, rtol=1e-5, atol=1e-5), (loss, ref)

    # Also exercise the multi-tile / ragged path (N not a multiple of the
    # tile, >=2 grid steps) to validate in-kernel tail masking and the
    # partial-sum reduction without any wrapper-side logits padding.
    N2, C2 = 1000, 40
    k3, k4 = jax.random.split(k2)
    logits2 = jax.random.normal(k3, (N2, C2), dtype=jnp.float32)
    tgt2 = jax.random.randint(k4, (N2,), 0, C2, dtype=jnp.int32)
    loss2 = jax.block_until_ready(cross_entropy_loss_pallas(logits2, tgt2))
    logp2 = jax.nn.log_softmax(logits2, axis=-1)
    ref2 = -jnp.mean(logp2[jnp.arange(N2), tgt2])
    assert jnp.allclose(loss2, ref2, rtol=1e-5, atol=1e-5), (loss2, ref2)

    print("KERNEL_OK")
</pallas_src>

<mosaic_0001>
module attributes {stable_mosaic.version = 11 : i64} {
  func.func @_ce_partial_kernel(%arg0: i32, %arg1: memref<8x32xf32, #tpu.memory_space<vmem>>, %arg2: memref<8x1xi32, #tpu.memory_space<vmem>>, %arg3: memref<1x1xf32, #tpu.memory_space<vmem>>) attributes {dimension_semantics = [#tpu.dimension_semantics<parallel>], iteration_bounds = array<i64: 1>, scalar_prefetch = 0 : i64, scratch_operands = 0 : i64, tpu.core_type = #tpu.core_type<tc>, window_params = [{transform_indices = @transform_0, window_bounds = array<i64: 8, 32>}, {transform_indices = @transform_1, window_bounds = array<i64: 8, 1>}, {transform_indices = @transform_2, window_bounds = array<i64: 1, 1>}]} {
    %c0 = arith.constant 0 : index
    %c0_0 = arith.constant 0 : index
    %0 = vector.load %arg1[%c0, %c0_0] : memref<8x32xf32, #tpu.memory_space<vmem>>, vector<8x32xf32>
    %c0_1 = arith.constant 0 : index
    %c0_2 = arith.constant 0 : index
    %1 = vector.load %arg2[%c0_1, %c0_2] : memref<8x1xi32, #tpu.memory_space<vmem>>, vector<8x1xi32>
    %cst = arith.constant dense<0xFF800000> : vector<8xf32>
    %2 = vector.multi_reduction <maximumf>, %0, %cst [1] : vector<8x32xf32> to vector<8xf32>
    %3 = vector.shape_cast %2 : vector<8xf32> to vector<8x1xf32>
    %4 = vector.broadcast %3 : vector<8x1xf32> to vector<8x32xf32>
    %5 = arith.subf %0, %4 : vector<8x32xf32>
    %6 = math.exp %5 : vector<8x32xf32>
    %cst_3 = arith.constant dense<0.000000e+00> : vector<8xf32>
    %7 = vector.multi_reduction <add>, %6, %cst_3 [1] : vector<8x32xf32> to vector<8xf32>
    %8 = vector.shape_cast %7 : vector<8xf32> to vector<8x1xf32>
    %9 = tpu.iota {dimensions = array<i32: 1>} : vector<8x32xi32>
    %10 = vector.broadcast %1 : vector<8x1xi32> to vector<8x32xi32>
    %11 = arith.cmpi eq, %9, %10 : vector<8x32xi32>
    %cst_4 = arith.constant 0.000000e+00 : f32
    %12 = vector.broadcast %cst_4 : f32 to vector<8x32xf32>
    %13 = arith.select %11, %5, %12 : vector<8x32xi1>, vector<8x32xf32>
    %cst_5 = arith.constant dense<0.000000e+00> : vector<8xf32>
    %14 = vector.multi_reduction <add>, %13, %cst_5 [1] : vector<8x32xf32> to vector<8xf32>
    %15 = vector.shape_cast %14 : vector<8xf32> to vector<8x1xf32>
    %16 = math.log %8 : vector<8x1xf32>
    %17 = arith.subf %16, %15 : vector<8x1xf32>
    %c8_i32 = arith.constant 8 : i32
    %18 = arith.muli %arg0, %c8_i32 : i32
    %19 = tpu.iota {dimensions = array<i32: 0>} : vector<8x1xi32>
    %20 = vector.broadcast %18 : i32 to vector<8x1xi32>
    %21 = arith.addi %19, %20 : vector<8x1xi32>
    %c8_i32_6 = arith.constant 8 : i32
    %22 = vector.broadcast %c8_i32_6 : i32 to vector<8x1xi32>
    %23 = arith.cmpi slt, %21, %22 : vector<8x1xi32>
    %cst_7 = arith.constant 0.000000e+00 : f32
    %24 = vector.broadcast %cst_7 : f32 to vector<8x1xf32>
    %25 = arith.select %23, %17, %24 : vector<8x1xi1>, vector<8x1xf32>
    %26 = vector.shape_cast %25 : vector<8x1xf32> to vector<1x8x1xf32>
    %cst_8 = arith.constant dense<0.000000e+00> : vector<1xf32>
    %27 = vector.multi_reduction <add>, %26, %cst_8 [1, 2] : vector<1x8x1xf32> to vector<1xf32>
    %28 = vector.shape_cast %27 : vector<1xf32> to vector<1x1x1xf32>
    %29 = vector.extract %28[0, 0, 0] : f32 from vector<1x1x1xf32>
    %30 = vector.broadcast %29 : f32 to vector<1x1xf32>
    %c0_9 = arith.constant 0 : index
    %c0_10 = arith.constant 0 : index
    %31 = vector.load %arg3[%c0_9, %c0_10] : memref<1x1xf32, #tpu.memory_space<vmem>>, vector<1x1xf32>
    tpu.vector_store %arg3[%c0_9, %c0_10], %30 {strides = array<i32>} : memref<1x1xf32, #tpu.memory_space<vmem>>, vector<1x1xf32>,
    return
  }
  func.func @transform_0(%arg0: i32) -> (i32, i32) {
    %c0_i32 = arith.constant 0 : i32
    %c0_i32_0 = arith.constant 0 : i32
    return %arg0, %c0_i32 : i32, i32
  }
  func.func @transform_1(%arg0: i32) -> (i32, i32) {
    %c0_i32 = arith.constant 0 : i32
    %c0_i32_0 = arith.constant 0 : i32
    return %arg0, %c0_i32 : i32, i32
  }
  func.func @transform_2(%arg0: i32) -> (i32, i32) {
    %c0_i32 = arith.constant 0 : i32
    %c0_i32_0 = arith.constant 0 : i32
    return %arg0, %c0_i32 : i32, i32
  }
}

</mosaic_0001>

<llo_original>
// kernel: cross_entropy_loss_pallas.1
$region0: #{cross_entropy_loss_pallas.1}
  #allocation0 [shape = 'u32[]', space=smem, size = 0x4, offset = 0x4, fixed_abs, tag = 'smem constant byte address 0x4 - core index']
  #allocation1 [shape = 'u32[144,128]{1,0:T(1,128)}', space=vmem, size = 0x12000, scoped, tag = 'internal scratch']
  %s0 = inlined_call_operand.vmem [shape: f32[8,32], index: 0, kind: input, shape index: {}]
  %s1 = inlined_call_operand.vmem [shape: s32[8,1], index: 1, kind: input, shape index: {}]
  %s2 = inlined_call_operand.hbm [shape: f32[1,1], index: 2, kind: output, shape index: {}]
  %s3 = sld [smem:[#allocation0]]
  $region18: #{cross_entropy_loss_pallas.1} parent=0
    _
  %s5 = ssub.s32 1, %s3
  %s6 = scalar_select 0, %s5, %s3
  $region1: #{cross_entropy_loss_pallas.1} parent=0
    #allocation2 [shape = 'u8[512]{0}', space=vmem, size = 0x400, scoped, tag = 'output window, operand 0, single buffered']
    #allocation3 [shape = 's32[1]{0}', space=sflag, size = 0x4, scoped, tag = 'scoped memory for cross_entropy_loss_pallas.1']
    %7 = vsyncpa [#allocation3], 0
    // Predicated region
    $region2: #{cross_entropy_loss_pallas.1} parent=1 // pred_check
      _
    $region3: #{cross_entropy_loss_pallas.1} parent=1 // pred_check_branch
      %9 = sbr.rel (0) target = $region5
    $region4: #{cross_entropy_loss_pallas.1} parent=1 // pred_region
      _
    $region5: #{cross_entropy_loss_pallas.1} parent=1 // pred_fallthru
      _
    // Predicated region
    $region6: #{cross_entropy_loss_pallas.1} parent=1 // pred_check
      _
    $region7: #{cross_entropy_loss_pallas.1} parent=1 // pred_check_branch
      %11 = sbr.rel (0) target = $region9
    $region8: #{cross_entropy_loss_pallas.1} parent=1 // pred_region
      _
    $region9: #{cross_entropy_loss_pallas.1} parent=1 // pred_fallthru
      _
    %v12 = vld [vmem:[%s0] sm:$0xff]
    %v13 = vld [vmem:[%s1] sm:$0xff]
    %vm14 = vcmask 261120
    %v15 = vsel %vm14, %v12, -inf
    %16 = vmax.xlane.f32.xlu0 %v15
    %v17 = vpop.xlane.xlu0 %16
    %v18 = vsub.f32 %v12, %v17
    %v19 = vmul.f32 %v18, 1.442695
    %v20 = vpow.pop %v19
    %v21 = vsel %vm14, %v20, 0.0
    %22 = vadd.xlane.f32.xlu0 %v21
    %v23 = vpop.xlane.xlu0 %22
    %v24 = vlaneseq
    %v25 = vand.u32 %v24, 127
    %26 = vset.pattern.permute.xlu0 0
    %27 = vperm.xlu0 %26, %v13
    %v28 = vpop.permute.xlu0 %27
    %vm29 = vcmp.eq.s32.totalorder %v25, %v28
    %v30 = vsel %vm29, %v18, 0.0
    %v31 = vsel %vm14, %v30, 0.0
    %32 = vadd.xlane.f32.xlu0 %v31
    %v33 = vpop.xlane.xlu0 %32
    %v34 = vlog2.pop %v23
    %v35 = vmul.f32 %v34, 0.6931472
    %v36 = vsub.f32 %v35, %v33
    %s37 = smul.u32 0, 8
    %v38 = vlaneseq
    %v39 = vshrl.u32 %v38, 7
    %v40 = vstv %s37
    %v41 = vadd.s32 %v39, %v40
    %vm42 = vcmp.lt.s32.totalorder %v41, 8
    %v43 = vsel %vm42, %v36, 0.0
    %vm44 = vcmask 7168
    %v45 = vsel %vm44, %v43, 0.0
    %46 = vadd.xlane.f32.xlu0 %v45
    %v47 = vpop.xlane.xlu0 %46
    %v48 = vrot.slane %v47, 4
    %v49 = vadd.f32 %v47, %v48
    %v50 = vrot.slane %v49, 2
    %v51 = vadd.f32 %v49, %v50
    %v52 = vrot.slane %v51, 1
    %v53 = vadd.f32 %v51, %v52
    %s54 = vtos %v53
    %v55 = vstv %s54
    %vm56 = vcmask 0
    %57 = vst.msk [vmem:[#allocation2] sm:$0x1] %vm56, %v55
    // Predicated region
    $region10: #{cross_entropy_loss_pallas.1} parent=1 // pred_check
      _
    $region11: #{cross_entropy_loss_pallas.1} parent=1 // pred_check_branch
      %59 = sbr.rel (0) target = $region13
    $region12: #{cross_entropy_loss_pallas.1} parent=1 // pred_region
      %s61 = ssub.s32 16, 16
      %62 = vsyncadd [#allocation3], %s61
      %s64 = sshll.u32 [#allocation2], 4
      %s65 = int_to_ptr.vmem [resolvable:$true] %s64
      %67 = dma.vmem_to_hbm [thread:$0]  %s65, 16, %s2, [#allocation3]
    $region13: #{cross_entropy_loss_pallas.1} parent=1 // pred_fallthru
      _
    // Predicated region
    $region14: #{cross_entropy_loss_pallas.1} parent=1 // pred_check
      _
    $region15: #{cross_entropy_loss_pallas.1} parent=1 // pred_check_branch
      %69 = sbr.rel (0) target = $region17
    $region16: #{cross_entropy_loss_pallas.1} parent=1 // pred_region
      %70 = dma.done [#allocation3], 16
    $region17: #{cross_entropy_loss_pallas.1} parent=1 // pred_fallthru
      _
    %71 = vsyncpa [#allocation3], 1

</llo_original>
